<compile_context>
chip_gen: v6e
topology: v6e:2x2x1
jax: 0.10.0
libtpu: 0.0.40
codegen_flags: <defaults>
</compile_context>

<pallas_src>
import functools

import jax
import jax.numpy as jnp
from jax import lax
from jax.experimental import pallas as pl
from jax.experimental.pallas import tpu as pltpu

_LANE = 128                     # TPU lane width
_MAX_TK = 2048                  # upper bound on the K chunk
_FALLBACK_ROW_TILE = 256        # Gram-row tile in the fallback path (MXU-friendly)
_TILE_VMEM_BUDGET = 40 << 20    # bytes of VMEM for resident / double-buffered tiles
_VMEM_LIMIT = 56 << 20          # scoped-VMEM limit (fits v7x's 64 MiB physical)


def _round_up(x, m):
    return (x + m - 1) // m * m


def _plan(M, K, itemsize, force_rows=False):
    """Pick tiling: full-Gram-resident accumulator vs. row-tiled fallback."""
    m_pad = _round_up(M, _LANE)
    # Worst-case resident footprint is the loss path (gram acc + target + out),
    # conservatively counted as double-buffered.  Using the same rule for the
    # gram-only call keeps m_pad identical between __init__ and forward.
    resident_bytes = 6 * m_pad * m_pad * 4
    use_resident = (not force_rows) and (
        resident_bytes + 2 * m_pad * _LANE * 4 <= _TILE_VMEM_BUDGET)
    if use_resident:
        row_tile = None
    else:
        row_tile = _FALLBACK_ROW_TILE if M > _LANE else _LANE
        m_pad = _round_up(M, row_tile)
        # out block (x2) + target block (x2) + acc scratch (x1)
        resident_bytes = 5 * row_tile * m_pad * 4
    # K chunking: minimize padding, respect _MAX_TK and the VMEM budget
    # (the (m_pad, tk) streamed block is double-buffered by the pipeline).
    nc = max(1, -(-K // _MAX_TK))
    tk = _round_up(-(-K // nc), _LANE)
    tk_cap = (_TILE_VMEM_BUDGET - resident_bytes) // (2 * m_pad * itemsize)
    tk_cap = max(_LANE, (tk_cap // _LANE) * _LANE)
    tk = min(tk, tk_cap)
    k_pad = _round_up(K, tk)
    return use_resident, m_pad, row_tile, tk, k_pad


def _padded_features(x_nchw, m_pad, k_pad):
    """(M, K) feature matrix, zero-padded only if needed (keeps input dtype)."""
    B, C, H, W = x_nchw.shape
    M, K = B * C, H * W
    feats = x_nchw.reshape(M, K)
    if (m_pad, k_pad) != (M, K):
        feats = jnp.pad(feats, ((0, m_pad - M), (0, k_pad - K)))
    return feats


# ---------------------------------------------------------------------------
# Kernels.  The contraction is on the last axis of both operands (F @ F.T),
# the MXU-friendly "rhs transposed" form; no F.T is materialized in VMEM.
# ---------------------------------------------------------------------------
def _gram_resident_kernel(f_ref, g_ref, *, inv_norm):
    """G (resident f32 output) += F[:, chunk] @ F[:, chunk].T over k."""
    k = pl.program_id(0)

    @pl.when(k == 0)
    def _():
        g_ref[...] = jnp.zeros_like(g_ref)

    f = f_ref[...]
    g_ref[...] += lax.dot_general(
        f, f, dimension_numbers=(((1,), (1,)), ((), ())),
        preferred_element_type=jnp.float32)

    @pl.when(k == pl.num_programs(0) - 1)
    def _():
        g_ref[...] = g_ref[...] * inv_norm


def _loss_resident_kernel(f_ref, t_ref, partial_ref, acc_ref, *, inv_norm):
    """Same accumulation, emit only the total squared-error sum (scalar)."""
    k = pl.program_id(0)

    @pl.when(k == 0)
    def _():
        acc_ref[...] = jnp.zeros_like(acc_ref)

    f = f_ref[...]
    acc_ref[...] += lax.dot_general(
        f, f, dimension_numbers=(((1,), (1,)), ((), ())),
        preferred_element_type=jnp.float32)

    @pl.when(k == pl.num_programs(0) - 1)
    def _():
        diff = acc_ref[...] * inv_norm - t_ref[...]
        sq = jnp.sum(diff * diff)
        partial_ref[...] = jnp.full(partial_ref.shape, sq, dtype=jnp.float32)


def _gram_rows_kernel(f_ref, g_ref, *, inv_norm, row_tile):
    """Fallback (large M): G[row_tile, :] accumulated in the f32 output block.

    The row tile is sliced out of the already-resident all-rows block, so the
    feature matrix is DMA'd exactly once per (i, k) step (no duplicate operand).
    """
    i = pl.program_id(0)
    k = pl.program_id(1)

    @pl.when(k == 0)
    def _():
        g_ref[...] = jnp.zeros_like(g_ref)

    row0 = pl.multiple_of(i * row_tile, row_tile)
    f_rows = f_ref[pl.ds(row0, row_tile), :]
    g_ref[...] += lax.dot_general(
        f_rows, f_ref[...], dimension_numbers=(((1,), (1,)), ((), ())),
        preferred_element_type=jnp.float32)

    @pl.when(k == pl.num_programs(1) - 1)
    def _():
        g_ref[...] = g_ref[...] * inv_norm


def _loss_rows_kernel(f_ref, t_ref, partial_ref, acc_ref, *, inv_norm, row_tile):
    """Fallback loss: per-row-tile partial squared-error sums."""
    i = pl.program_id(0)
    k = pl.program_id(1)

    @pl.when(k == 0)
    def _():
        acc_ref[...] = jnp.zeros_like(acc_ref)

    row0 = pl.multiple_of(i * row_tile, row_tile)
    f_rows = f_ref[pl.ds(row0, row_tile), :]
    acc_ref[...] += lax.dot_general(
        f_rows, f_ref[...], dimension_numbers=(((1,), (1,)), ((), ())),
        preferred_element_type=jnp.float32)

    @pl.when(k == pl.num_programs(1) - 1)
    def _():
        diff = acc_ref[...] * inv_norm - t_ref[...]
        sq = jnp.sum(diff * diff)
        partial_ref[...] = jnp.full(partial_ref.shape, sq, dtype=jnp.float32)


# ---------------------------------------------------------------------------
# Wrappers.
# ---------------------------------------------------------------------------
def _gram_padded(x_nchw, force_rows=False):
    """(m_pad, m_pad) f32 normalized Gram matrix of the zero-padded features."""
    B, C, H, W = x_nchw.shape
    M, K = B * C, H * W
    inv_norm = 1.0 / float(M * K)
    itemsize = jnp.dtype(x_nchw.dtype).itemsize
    use_resident, m_pad, row_tile, tk, k_pad = _plan(M, K, itemsize, force_rows)
    feats = _padded_features(x_nchw, m_pad, k_pad)
    num_k = k_pad // tk
    params = pltpu.CompilerParams(
        dimension_semantics=("arbitrary",) if use_resident
        else ("parallel", "arbitrary"),
        vmem_limit_bytes=_VMEM_LIMIT)

    if use_resident:
        cost = pl.CostEstimate(
            flops=2 * m_pad * m_pad * k_pad, transcendentals=0,
            bytes_accessed=int(m_pad * k_pad * itemsize + m_pad * m_pad * 4))
        return pl.pallas_call(
            functools.partial(_gram_resident_kernel, inv_norm=inv_norm),
            out_shape=jax.ShapeDtypeStruct((m_pad, m_pad), jnp.float32),
            grid=(num_k,),
            in_specs=[pl.BlockSpec((m_pad, tk), lambda k: (0, k))],
            out_specs=pl.BlockSpec((m_pad, m_pad), lambda k: (0, 0)),
            compiler_params=params,
            cost_estimate=cost,
        )(feats)

    num_i = m_pad // row_tile
    cost = pl.CostEstimate(
        flops=2 * m_pad * m_pad * k_pad, transcendentals=0,
        bytes_accessed=int(num_i * m_pad * k_pad * itemsize + m_pad * m_pad * 4))
    return pl.pallas_call(
        functools.partial(_gram_rows_kernel, inv_norm=inv_norm, row_tile=row_tile),
        out_shape=jax.ShapeDtypeStruct((m_pad, m_pad), jnp.float32),
        grid=(num_i, num_k),
        in_specs=[pl.BlockSpec((m_pad, tk), lambda i, k: (0, k))],
        out_specs=pl.BlockSpec((row_tile, m_pad), lambda i, k: (i, 0)),
        compiler_params=params,
        cost_estimate=cost,
    )(feats)


def _style_mse_loss(x_nchw, target_gram_padded, force_rows=False):
    """Scalar MSE(G(x), target); the Gram of x never leaves VMEM."""
    B, C, H, W = x_nchw.shape
    M, K = B * C, H * W
    inv_norm = 1.0 / float(M * K)
    itemsize = jnp.dtype(x_nchw.dtype).itemsize
    use_resident, m_pad, row_tile, tk, k_pad = _plan(M, K, itemsize, force_rows)
    assert target_gram_padded.shape == (m_pad, m_pad)
    feats = _padded_features(x_nchw, m_pad, k_pad)
    num_k = k_pad // tk
    params = pltpu.CompilerParams(
        dimension_semantics=("arbitrary",) if use_resident
        else ("parallel", "arbitrary"),
        vmem_limit_bytes=_VMEM_LIMIT)

    if use_resident:
        cost = pl.CostEstimate(
            flops=2 * m_pad * m_pad * k_pad, transcendentals=0,
            bytes_accessed=int(m_pad * k_pad * itemsize + m_pad * m_pad * 4))
        partials = pl.pallas_call(
            functools.partial(_loss_resident_kernel, inv_norm=inv_norm),
            out_shape=jax.ShapeDtypeStruct((1, 8, _LANE), jnp.float32),
            grid=(num_k,),
            in_specs=[
                pl.BlockSpec((m_pad, tk), lambda k: (0, k)),       # F chunk
                pl.BlockSpec((m_pad, m_pad), lambda k: (0, 0)),    # target (resident)
            ],
            out_specs=pl.BlockSpec((1, 8, _LANE), lambda k: (0, 0, 0)),
            scratch_shapes=[pltpu.VMEM((m_pad, m_pad), jnp.float32)],
            compiler_params=params,
            cost_estimate=cost,
        )(feats, target_gram_padded)
    else:
        num_i = m_pad // row_tile
        cost = pl.CostEstimate(
            flops=2 * m_pad * m_pad * k_pad, transcendentals=0,
            bytes_accessed=int(num_i * m_pad * k_pad * itemsize
                               + m_pad * m_pad * 4))
        partials = pl.pallas_call(
            functools.partial(_loss_rows_kernel, inv_norm=inv_norm,
                              row_tile=row_tile),
            out_shape=jax.ShapeDtypeStruct((num_i, 8, _LANE), jnp.float32),
            grid=(num_i, num_k),
            in_specs=[
                pl.BlockSpec((m_pad, tk), lambda i, k: (0, k)),          # F chunk
                pl.BlockSpec((row_tile, m_pad), lambda i, k: (i, 0)),    # target rows
            ],
            out_specs=pl.BlockSpec((1, 8, _LANE), lambda i, k: (i, 0, 0)),
            scratch_shapes=[pltpu.VMEM((row_tile, m_pad), jnp.float32)],
            compiler_params=params,
            cost_estimate=cost,
        )(feats, target_gram_padded)

    # Padded rows/cols have zero features on both sides -> zero diff; the MSE
    # mean therefore divides by the TRUE (unpadded) M*M element count.
    return jnp.sum(partials[:, 0, 0]) / float(M * M)


class StyleLoss:
    """JAX/Pallas port of the PyTorch StyleLoss module (forward pass)."""

    def __init__(self, target_feature):
        B, C, _, _ = target_feature.shape
        self._M = B * C
        # Gram-only kernel: no dummy target, no dead loss reduction at setup.
        self._target_padded = _gram_padded(target_feature)
        # Same value PyTorch stores as self.target (unpadded view).
        self.target = self._target_padded[: self._M, : self._M]
        self.loss = None

    def forward(self, x):
        self.loss = _style_mse_loss(x, self._target_padded)
        return x  # input passes through unchanged, as in PyTorch

    __call__ = forward


if __name__ == "__main__":
    key = jax.random.PRNGKey(0)
    k_target, k_input, k_t2, k_x2 = jax.random.split(key, 4)

    def gram_ref(t):
        b, c, h, w = t.shape
        f = t.reshape(b * c, h * w).astype(jnp.float32)
        return (f @ f.T) / (b * c * h * w)

    # Small shapes consistent with the module: (B, C, H, W) = (2, 4, 16, 16).
    B, C, H, W = 2, 4, 16, 16
    target_feature = jax.random.normal(k_target, (B, C, H, W), dtype=jnp.float32)
    x = jax.random.normal(k_input, (B, C, H, W), dtype=jnp.float32)

    module = StyleLoss(target_feature)
    out = jax.block_until_ready(module(x))
    loss = jax.block_until_ready(module.loss)

    g_tgt_ref = gram_ref(target_feature)
    loss_ref = jnp.mean((gram_ref(x) - g_tgt_ref) ** 2)

    assert out.shape == x.shape
    assert jnp.allclose(out, x)
    assert jnp.allclose(module.target, g_tgt_ref, rtol=1e-5, atol=1e-6)
    assert jnp.allclose(loss, loss_ref, rtol=1e-5, atol=1e-6)

    # Also exercise the row-tiled fallback path (used only for very large B*C)
    # at a small shape that includes a non-zero in-kernel row-tile offset.
    B2, C2, H2, W2 = 2, 160, 8, 8   # M = 320 -> m_pad = 512, row_tile = 256
    tf2 = jax.random.normal(k_t2, (B2, C2, H2, W2), dtype=jnp.float32)
    x2 = jax.random.normal(k_x2, (B2, C2, H2, W2), dtype=jnp.float32)
    tgt2_padded = jax.block_until_ready(_gram_padded(tf2, force_rows=True))
    loss2 = jax.block_until_ready(
        _style_mse_loss(x2, tgt2_padded, force_rows=True))
    M2 = B2 * C2
    g2_ref = gram_ref(tf2)
    loss2_ref = jnp.mean((gram_ref(x2) - g2_ref) ** 2)
    assert jnp.allclose(tgt2_padded[:M2, :M2], g2_ref, rtol=1e-5, atol=1e-6)
    assert jnp.allclose(loss2, loss2_ref, rtol=1e-5, atol=1e-6)

    print("KERNEL_OK")
</pallas_src>

<mosaic_0001>
module attributes {stable_mosaic.version = 11 : i64} {
  func.func @_gram_resident_kernel(%arg0: i32, %arg1: memref<128x256xf32, #tpu.memory_space<vmem>>, %arg2: memref<128x128xf32, #tpu.memory_space<vmem>>) attributes {dimension_semantics = [#tpu.dimension_semantics<arbitrary>], iteration_bounds = array<i64: 1>, scalar_prefetch = 0 : i64, scratch_operands = 0 : i64, tpu.core_type = #tpu.core_type<tc>, window_params = [{transform_indices = @transform_0, window_bounds = array<i64: 128, 256>}, {pipeline_mode = #tpu.pipeline_mode<synchronous>, transform_indices = @transform_1, window_bounds = array<i64: 128, 128>}]} {
    %c0_i32 = arith.constant 0 : i32
    %0 = arith.cmpi eq, %arg0, %c0_i32 : i32
    %1 = arith.extui %0 : i1 to i32
    %c0_i32_0 = arith.constant 0 : i32
    %2 = arith.cmpi ne, %1, %c0_i32_0 : i32
    scf.if %2 {
      %cst_8 = arith.constant 0.000000e+00 : f32
      %11 = vector.broadcast %cst_8 : f32 to vector<128x128xf32>
      %c0_9 = arith.constant 0 : index
      %c0_10 = arith.constant 0 : index
      %12 = vector.load %arg2[%c0_9, %c0_10] : memref<128x128xf32, #tpu.memory_space<vmem>>, vector<128x128xf32>
      tpu.vector_store %arg2[%c0_9, %c0_10], %11 {strides = array<i32>} : memref<128x128xf32, #tpu.memory_space<vmem>>, vector<128x128xf32>,
    } else {
    }
    %c0 = arith.constant 0 : index
    %c0_1 = arith.constant 0 : index
    %3 = vector.load %arg1[%c0, %c0_1] : memref<128x256xf32, #tpu.memory_space<vmem>>, vector<128x256xf32>
    %c0_2 = arith.constant 0 : index
    %c0_3 = arith.constant 0 : index
    %4 = vector.load %arg2[%c0_2, %c0_3] : memref<128x128xf32, #tpu.memory_space<vmem>>, vector<128x128xf32>
    %cst = arith.constant dense<0.000000e+00> : vector<128x128xf32>
    %5 = tpu.matmul %3, %3, %cst {dimension_numbers = #tpu.dot_dimension_numbers<[1], [1], [0], [0], [0, 0, 1, 0], [], []>} : vector<128x256xf32>, vector<128x256xf32>, vector<128x128xf32> -> vector<128x128xf32>
    %6 = arith.addf %4, %5 : vector<128x128xf32>
    %c0_4 = arith.constant 0 : index
    %c0_5 = arith.constant 0 : index
    %7 = vector.load %arg2[%c0_4, %c0_5] : memref<128x128xf32, #tpu.memory_space<vmem>>, vector<128x128xf32>
    tpu.vector_store %arg2[%c0_4, %c0_5], %6 {strides = array<i32>} : memref<128x128xf32, #tpu.memory_space<vmem>>, vector<128x128xf32>,
    %c0_i32_6 = arith.constant 0 : i32
    %8 = arith.cmpi eq, %arg0, %c0_i32_6 : i32
    %9 = arith.extui %8 : i1 to i32
    %c0_i32_7 = arith.constant 0 : i32
    %10 = arith.cmpi ne, %9, %c0_i32_7 : i32
    scf.if %10 {
      %c0_8 = arith.constant 0 : index
      %c0_9 = arith.constant 0 : index
      %11 = vector.load %arg2[%c0_8, %c0_9] : memref<128x128xf32, #tpu.memory_space<vmem>>, vector<128x128xf32>
      %cst_10 = arith.constant 4.8828125E-4 : f32
      %12 = vector.broadcast %cst_10 : f32 to vector<128x128xf32>
      %13 = arith.mulf %11, %12 : vector<128x128xf32>
      %c0_11 = arith.constant 0 : index
      %c0_12 = arith.constant 0 : index
      %14 = vector.load %arg2[%c0_11, %c0_12] : memref<128x128xf32, #tpu.memory_space<vmem>>, vector<128x128xf32>
      tpu.vector_store %arg2[%c0_11, %c0_12], %13 {strides = array<i32>} : memref<128x128xf32, #tpu.memory_space<vmem>>, vector<128x128xf32>,
    } else {
    }
    return
  }
  func.func @transform_0(%arg0: i32) -> (i32, i32) {
    %c0_i32 = arith.constant 0 : i32
    %c0_i32_0 = arith.constant 0 : i32
    return %c0_i32, %arg0 : i32, i32
  }
  func.func @transform_1(%arg0: i32) -> (i32, i32) {
    %c0_i32 = arith.constant 0 : i32
    %c0_i32_0 = arith.constant 0 : i32
    %c0_i32_1 = arith.constant 0 : i32
    return %c0_i32, %c0_i32_0 : i32, i32
  }
}

</mosaic_0001>

<llo_original>
// kernel: tpu_custom_call.1
$region0: #{tpu_custom_call.1}
  #allocation0 [shape = 'u32[]', space=smem, size = 0x4, offset = 0x4, fixed_abs, tag = 'smem constant byte address 0x4 - core index']
  #allocation1 [shape = 'u32[144,128]{1,0:T(1,128)}', space=vmem, size = 0x12000, scoped, tag = 'internal scratch']
  %s0 = inlined_call_operand.hbm [shape: f32[128,256], index: 0, kind: input, shape index: {}]
  %s1 = inlined_call_operand.hbm [shape: f32[128,128], index: 1, kind: output, shape index: {}]
  %s2 = sld [smem:[#allocation0]]
  $region26: #{tpu_custom_call.1} parent=0
    _
  %s4 = ssub.s32 1, %s2
  %s5 = scalar_select 0, %s4, %s2
  $region1: #{tpu_custom_call.1} parent=0
    #allocation2 [shape = 'u8[131072]{0}', space=vmem, size = 0x20000, scoped, tag = 'input window, operand 0, single buffered']
    #allocation3 [shape = 's32[1]{0}', space=sflag, size = 0x4, scoped, tag = 'scoped memory for tpu_custom_call.1']
    #allocation4 [shape = 's32[1]{0}', space=sflag, size = 0x4, scoped, tag = 'scoped memory for tpu_custom_call.1']
    #allocation5 [shape = 'u8[65536]{0}', space=vmem, size = 0x10000, scoped, tag = 'output window, operand 0, single buffered']
    %6 = vsyncpa [#allocation3], 0
    %7 = vsyncpa [#allocation4], 0
    // Predicated region
    $region2: #{tpu_custom_call.1} parent=1 // pred_check
      _
    $region3: #{tpu_custom_call.1} parent=1 // pred_check_branch
      %9 = sbr.rel (0) target = $region5
    $region4: #{tpu_custom_call.1} parent=1 // pred_region
      %s11 = ssub.s32 4096, 4096
      %12 = vsyncadd [#allocation3], %s11
      %s13 = sshll.u32 [#allocation2], 4
      %s14 = int_to_ptr.vmem [resolvable:$true] %s13
      %19 = dma.hbm_to_vmem [thread:$0]  %s0, 4096, %s14, [#allocation3], 256, 256, 16
    $region5: #{tpu_custom_call.1} parent=1 // pred_fallthru
      _
    // Predicated region
    $region6: #{tpu_custom_call.1} parent=1 // pred_check
      _
    $region7: #{tpu_custom_call.1} parent=1 // pred_check_branch
      %21 = sbr.rel (0) target = $region9
    $region8: #{tpu_custom_call.1} parent=1 // pred_region
      %22 = dma.done [#allocation3], 4096
    $region9: #{tpu_custom_call.1} parent=1 // pred_fallthru
      _
    %p23 = scmp.eq.s32.totalorder 0, 0
    // Predicated region
    $region10: #{tpu_custom_call.1} parent=1 // pred_check
      %p24 = pneg %p23
    $region11: #{tpu_custom_call.1} parent=1 // pred_check_branch
      %26 = sbr.rel (%p24) target = $region13
    $region12: #{tpu_custom_call.1} parent=1 // pred_region
      %27 = vst [vmem:[#allocation5] sm:$0xff] 0.0
      %28 = vst [vmem:[#allocation5 + $0x8] sm:$0xff] 0.0
      %29 = vst [vmem:[#allocation5 + $0x10] sm:$0xff] 0.0
      %30 = vst [vmem:[#allocation5 + $0x18] sm:$0xff] 0.0
      %31 = vst [vmem:[#allocation5 + $0x20] sm:$0xff] 0.0
      %32 = vst [vmem:[#allocation5 + $0x28] sm:$0xff] 0.0
      %33 = vst [vmem:[#allocation5 + $0x30] sm:$0xff] 0.0
      %34 = vst [vmem:[#allocation5 + $0x38] sm:$0xff] 0.0
      %35 = vst [vmem:[#allocation5 + $0x40] sm:$0xff] 0.0
      %36 = vst [vmem:[#allocation5 + $0x48] sm:$0xff] 0.0
      %37 = vst [vmem:[#allocation5 + $0x50] sm:$0xff] 0.0
      %38 = vst [vmem:[#allocation5 + $0x58] sm:$0xff] 0.0
      %39 = vst [vmem:[#allocation5 + $0x60] sm:$0xff] 0.0
      %40 = vst [vmem:[#allocation5 + $0x68] sm:$0xff] 0.0
      %41 = vst [vmem:[#allocation5 + $0x70] sm:$0xff] 0.0
      %42 = vst [vmem:[#allocation5 + $0x78] sm:$0xff] 0.0
    $region13: #{tpu_custom_call.1} parent=1 // pred_fallthru
      _
    %v43 = vld [vmem:[#allocation2] sm:$0xff]
    %v44 = vld [vmem:[#allocation2 + $0x8] sm:$0xff]
    %v45 = vld [vmem:[#allocation2 + $0x10] sm:$0xff]
    %v46 = vld [vmem:[#allocation2 + $0x18] sm:$0xff]
    %v47 = vld [vmem:[#allocation2 + $0x20] sm:$0xff]
    %v48 = vld [vmem:[#allocation2 + $0x28] sm:$0xff]
    %v49 = vld [vmem:[#allocation2 + $0x30] sm:$0xff]
    %v50 = vld [vmem:[#allocation2 + $0x38] sm:$0xff]
    %v51 = vld [vmem:[#allocation2 + $0x40] sm:$0xff]
    %v52 = vld [vmem:[#allocation2 + $0x48] sm:$0xff]
    %v53 = vld [vmem:[#allocation2 + $0x50] sm:$0xff]
    %v54 = vld [vmem:[#allocation2 + $0x58] sm:$0xff]
    %v55 = vld [vmem:[#allocation2 + $0x60] sm:$0xff]
    %v56 = vld [vmem:[#allocation2 + $0x68] sm:$0xff]
    %v57 = vld [vmem:[#allocation2 + $0x70] sm:$0xff]
    %v58 = vld [vmem:[#allocation2 + $0x78] sm:$0xff]
    %v59 = vld [vmem:[#allocation2 + $0x80] sm:$0xff]
    %v60 = vld [vmem:[#allocation2 + $0x88] sm:$0xff]
    %v61 = vld [vmem:[#allocation2 + $0x90] sm:$0xff]
    %v62 = vld [vmem:[#allocation2 + $0x98] sm:$0xff]
    %v63 = vld [vmem:[#allocation2 + $0xa0] sm:$0xff]
    %v64 = vld [vmem:[#allocation2 + $0xa8] sm:$0xff]
    %v65 = vld [vmem:[#allocation2 + $0xb0] sm:$0xff]
    %v66 = vld [vmem:[#allocation2 + $0xb8] sm:$0xff]
    %v67 = vld [vmem:[#allocation2 + $0xc0] sm:$0xff]
    %v68 = vld [vmem:[#allocation2 + $0xc8] sm:$0xff]
    %v69 = vld [vmem:[#allocation2 + $0xd0] sm:$0xff]
    %v70 = vld [vmem:[#allocation2 + $0xd8] sm:$0xff]
    %v71 = vld [vmem:[#allocation2 + $0xe0] sm:$0xff]
    %v72 = vld [vmem:[#allocation2 + $0xe8] sm:$0xff]
    %v73 = vld [vmem:[#allocation2 + $0xf0] sm:$0xff]
    %v74 = vld [vmem:[#allocation2 + $0xf8] sm:$0xff]
    %v75 = vld [vmem:[#allocation5] sm:$0xff]
    %v76 = vld [vmem:[#allocation5 + $0x8] sm:$0xff]
    %v77 = vld [vmem:[#allocation5 + $0x10] sm:$0xff]
    %v78 = vld [vmem:[#allocation5 + $0x18] sm:$0xff]
    %v79 = vld [vmem:[#allocation5 + $0x20] sm:$0xff]
    %v80 = vld [vmem:[#allocation5 + $0x28] sm:$0xff]
    %v81 = vld [vmem:[#allocation5 + $0x30] sm:$0xff]
    %v82 = vld [vmem:[#allocation5 + $0x38] sm:$0xff]
    %v83 = vld [vmem:[#allocation5 + $0x40] sm:$0xff]
    %v84 = vld [vmem:[#allocation5 + $0x48] sm:$0xff]
    %v85 = vld [vmem:[#allocation5 + $0x50] sm:$0xff]
    %v86 = vld [vmem:[#allocation5 + $0x58] sm:$0xff]
    %v87 = vld [vmem:[#allocation5 + $0x60] sm:$0xff]
    %v88 = vld [vmem:[#allocation5 + $0x68] sm:$0xff]
    %v89 = vld [vmem:[#allocation5 + $0x70] sm:$0xff]
    %v90 = vld [vmem:[#allocation5 + $0x78] sm:$0xff]
    %91 = vmatprep.subr.mxu0 %v74
    %92 = vmatpush1.xpose.msra.mxu0 %v73
    %93 = vmatprep.subr.mxu0 %v72
    %94 = vmatpush1.xpose.msra.mxu0 %v71
    %95 = vmatprep.subr.mxu0 %v70
    %96 = vmatpush1.xpose.msra.mxu0 %v69
    %97 = vmatprep.subr.mxu0 %v68
    %98 = vmatpush1.xpose.msra.mxu0 %v67
    %99 = vmatprep.subr.mxu0 %v66
    %100 = vmatpush1.xpose.msra.mxu0 %v65
    %101 = vmatprep.subr.mxu0 %v64
    %102 = vmatpush1.xpose.msra.mxu0 %v63
    %103 = vmatprep.subr.mxu0 %v62
    %104 = vmatpush1.xpose.msra.mxu0 %v61
    %105 = vmatprep.subr.mxu0 %v60
    %106 = vmatpush1.xpose.msra.mxu0 %v59
    %107 = vmatprep.subr.mxu0 %v58
    %108 = vmatpush1.xpose.msra.mxu0 %v57
    %109 = vmatprep.subr.mxu0 %v56
    %110 = vmatpush1.xpose.msra.mxu0 %v55
    %111 = vmatprep.subr.mxu0 %v54
    %112 = vmatpush1.xpose.msra.mxu0 %v53
    %113 = vmatprep.subr.mxu0 %v52
    %114 = vmatpush1.xpose.msra.mxu0 %v51
    %115 = vmatprep.subr.mxu0 %v50
    %116 = vmatpush1.xpose.msra.mxu0 %v49
    %117 = vmatprep.subr.mxu0 %v48
    %118 = vmatpush1.xpose.msra.mxu0 %v47
    %119 = vmatprep.subr.mxu0 %v46
    %120 = vmatpush1.xpose.msra.mxu0 %v45
    %121 = vmatprep.subr.mxu0 %v44
    %122 = vmatpush1.xpose.msra.mxu0 %v43
    %123 = vmatprep.subr.mxu0 0.0
    %124 = vmatpush2.xpose.msra.mxu0 0.0
    %125 = vmatprep.subr.mxu0 0.0
    %126 = vmatpush2.xpose.msra.mxu0 0.0
    %127 = vmatprep.subr.mxu0 0.0
    %128 = vmatpush2.xpose.msra.mxu0 0.0
    %129 = vmatprep.subr.mxu0 0.0
    %130 = vmatpush2.xpose.msra.mxu0 0.0
    %131 = vmatprep.subr.mxu0 0.0
    %132 = vmatpush2.xpose.msra.mxu0 0.0
    %133 = vmatprep.subr.mxu0 0.0
    %134 = vmatpush2.xpose.msra.mxu0 0.0
    %135 = vmatprep.subr.mxu0 0.0
    %136 = vmatpush2.xpose.msra.mxu0 0.0
    %137 = vmatprep.subr.mxu0 0.0
    %138 = vmatpush2.xpose.msra.mxu0 0.0
    %139 = vmatprep.subr.mxu0 0.0
    %140 = vmatpush2.xpose.msra.mxu0 0.0
    %141 = vmatprep.subr.mxu0 0.0
    %142 = vmatpush2.xpose.msra.mxu0 0.0
    %143 = vmatprep.subr.mxu0 0.0
    %144 = vmatpush2.xpose.msra.mxu0 0.0
    %145 = vmatprep.subr.mxu0 0.0
    %146 = vmatpush2.xpose.msra.mxu0 0.0
    %147 = vmatprep.subr.mxu0 0.0
    %148 = vmatpush2.xpose.msra.mxu0 0.0
    %149 = vmatprep.subr.mxu0 0.0
    %150 = vmatpush2.xpose.msra.mxu0 0.0
    %151 = vmatprep.subr.mxu0 0.0
    %152 = vmatpush2.xpose.msra.mxu0 0.0
    %153 = vmatprep.subr.mxu0 0.0
    %154 = vmatpush2.xpose.msra.mxu0 0.0
    %155 = vmatprep.mubr.f32.mxu0 %v44
    %156 = vmatmul.mubr.f32.gmra.mxu0 %v43
    %v157 = vpop.f32.mrf.mxu0
    %v158 = vadd.f32 0.0, %v157
    %v159 = vpop.f32.mrf.mxu0
    %160 = vmatprep.mubr.f32.mxu0 %v46
    %161 = vmatmul.mubr.f32.gmra.mxu0 %v45
    %v162 = vpop.f32.mrf.mxu0
    %v163 = vadd.f32 0.0, %v162
    %v164 = vpop.f32.mrf.mxu0
    %165 = vmatprep.mubr.f32.mxu0 %v48
    %166 = vmatmul.mubr.f32.gmra.mxu0 %v47
    %v167 = vpop.f32.mrf.mxu0
    %v168 = vadd.f32 0.0, %v167
    %v169 = vpop.f32.mrf.mxu0
    %170 = vmatprep.mubr.f32.mxu0 %v50
    %171 = vmatmul.mubr.f32.gmra.mxu0 %v49
    %v172 = vpop.f32.mrf.mxu0
    %v173 = vadd.f32 0.0, %v172
    %v174 = vpop.f32.mrf.mxu0
    %175 = vmatprep.mubr.f32.mxu0 %v52
    %176 = vmatmul.mubr.f32.gmra.mxu0 %v51
    %v177 = vpop.f32.mrf.mxu0
    %v178 = vadd.f32 0.0, %v177
    %v179 = vpop.f32.mrf.mxu0
    %180 = vmatprep.mubr.f32.mxu0 %v54
    %181 = vmatmul.mubr.f32.gmra.mxu0 %v53
    %v182 = vpop.f32.mrf.mxu0
    %v183 = vadd.f32 0.0, %v182
    %v184 = vpop.f32.mrf.mxu0
    %185 = vmatprep.mubr.f32.mxu0 %v56
    %186 = vmatmul.mubr.f32.gmra.mxu0 %v55
    %v187 = vpop.f32.mrf.mxu0
    %v188 = vadd.f32 0.0, %v187
    %v189 = vpop.f32.mrf.mxu0
    %190 = vmatprep.mubr.f32.mxu0 %v58
    %191 = vmatmul.mubr.f32.gmra.mxu0 %v57
    %v192 = vpop.f32.mrf.mxu0
    %v193 = vadd.f32 0.0, %v192
    %v194 = vpop.f32.mrf.mxu0
    %195 = vmatprep.mubr.f32.mxu0 %v60
    %196 = vmatmul.mubr.f32.gmra.mxu0 %v59
    %v197 = vpop.f32.mrf.mxu0
    %v198 = vadd.f32 0.0, %v197
    %v199 = vpop.f32.mrf.mxu0
    %200 = vmatprep.mubr.f32.mxu0 %v62
    %201 = vmatmul.mubr.f32.gmra.mxu0 %v61
    %v202 = vpop.f32.mrf.mxu0
    %v203 = vadd.f32 0.0, %v202
    %v204 = vpop.f32.mrf.mxu0
    %205 = vmatprep.mubr.f32.mxu0 %v64
    %206 = vmatmul.mubr.f32.gmra.mxu0 %v63
    %v207 = vpop.f32.mrf.mxu0
    %v208 = vadd.f32 0.0, %v207
    %v209 = vpop.f32.mrf.mxu0
    %210 = vmatprep.mubr.f32.mxu0 %v66
    %211 = vmatmul.mubr.f32.gmra.mxu0 %v65
    %v212 = vpop.f32.mrf.mxu0
    %v213 = vadd.f32 0.0, %v212
    %v214 = vpop.f32.mrf.mxu0
    %215 = vmatprep.mubr.f32.mxu0 %v68
    %216 = vmatmul.mubr.f32.gmra.mxu0 %v67
    %v217 = vpop.f32.mrf.mxu0
    %v218 = vadd.f32 0.0, %v217
    %v219 = vpop.f32.mrf.mxu0
    %220 = vmatprep.mubr.f32.mxu0 %v70
    %221 = vmatmul.mubr.f32.gmra.mxu0 %v69
    %v222 = vpop.f32.mrf.mxu0
    %v223 = vadd.f32 0.0, %v222
    %v224 = vpop.f32.mrf.mxu0
    %225 = vmatprep.mubr.f32.mxu0 %v72
    %226 = vmatmul.mubr.f32.gmra.mxu0 %v71
    %v227 = vpop.f32.mrf.mxu0
    %v228 = vadd.f32 0.0, %v227
    %v229 = vpop.f32.mrf.mxu0
    %230 = vmatprep.mubr.f32.mxu0 %v74
    %231 = vmatmul.mubr.f32.gmra.mxu0 %v73
    %v232 = vpop.f32.mrf.mxu0
    %v233 = vadd.f32 0.0, %v232
    %v234 = vpop.f32.mrf.mxu0
    %235 = vdwg.mxu0
    %v236 = vadd.f32 %v75, %v158
    %v237 = vadd.f32 %v76, %v163
    %v238 = vadd.f32 %v77, %v168
    %v239 = vadd.f32 %v78, %v173
    %v240 = vadd.f32 %v79, %v178
    %v241 = vadd.f32 %v80, %v183
    %v242 = vadd.f32 %v81, %v188
    %v243 = vadd.f32 %v82, %v193
    %v244 = vadd.f32 %v83, %v198
    %v245 = vadd.f32 %v84, %v203
    %v246 = vadd.f32 %v85, %v208
    %v247 = vadd.f32 %v86, %v213
    %v248 = vadd.f32 %v87, %v218
    %v249 = vadd.f32 %v88, %v223
    %v250 = vadd.f32 %v89, %v228
    %v251 = vadd.f32 %v90, %v233
    %252 = vst [vmem:[#allocation5] sm:$0xff] %v236
    %253 = vst [vmem:[#allocation5 + $0x8] sm:$0xff] %v237
    %254 = vst [vmem:[#allocation5 + $0x10] sm:$0xff] %v238
    %255 = vst [vmem:[#allocation5 + $0x18] sm:$0xff] %v239
    %256 = vst [vmem:[#allocation5 + $0x20] sm:$0xff] %v240
    %257 = vst [vmem:[#allocation5 + $0x28] sm:$0xff] %v241
    %258 = vst [vmem:[#allocation5 + $0x30] sm:$0xff] %v242
    %259 = vst [vmem:[#allocation5 + $0x38] sm:$0xff] %v243
    %260 = vst [vmem:[#allocation5 + $0x40] sm:$0xff] %v244
    %261 = vst [vmem:[#allocation5 + $0x48] sm:$0xff] %v245
    %262 = vst [vmem:[#allocation5 + $0x50] sm:$0xff] %v246
    %263 = vst [vmem:[#allocation5 + $0x58] sm:$0xff] %v247
    %264 = vst [vmem:[#allocation5 + $0x60] sm:$0xff] %v248
    %265 = vst [vmem:[#allocation5 + $0x68] sm:$0xff] %v249
    %266 = vst [vmem:[#allocation5 + $0x70] sm:$0xff] %v250
    %267 = vst [vmem:[#allocation5 + $0x78] sm:$0xff] %v251
    // Predicated region
    $region14: #{tpu_custom_call.1} parent=1 // pred_check
      %p268 = pneg %p23
    $region15: #{tpu_custom_call.1} parent=1 // pred_check_branch
      %270 = sbr.rel (%p268) target = $region17
    $region16: #{tpu_custom_call.1} parent=1 // pred_region
      %v271 = vld [vmem:[#allocation5] sm:$0xff]
      %v272 = vld [vmem:[#allocation5 + $0x8] sm:$0xff]
      %v273 = vld [vmem:[#allocation5 + $0x10] sm:$0xff]
      %v274 = vld [vmem:[#allocation5 + $0x18] sm:$0xff]
      %v275 = vld [vmem:[#allocation5 + $0x20] sm:$0xff]
      %v276 = vld [vmem:[#allocation5 + $0x28] sm:$0xff]
      %v277 = vld [vmem:[#allocation5 + $0x30] sm:$0xff]
      %v278 = vld [vmem:[#allocation5 + $0x38] sm:$0xff]
      %v279 = vld [vmem:[#allocation5 + $0x40] sm:$0xff]
      %v280 = vld [vmem:[#allocation5 + $0x48] sm:$0xff]
      %v281 = vld [vmem:[#allocation5 + $0x50] sm:$0xff]
      %v282 = vld [vmem:[#allocation5 + $0x58] sm:$0xff]
      %v283 = vld [vmem:[#allocation5 + $0x60] sm:$0xff]
      %v284 = vld [vmem:[#allocation5 + $0x68] sm:$0xff]
      %v285 = vld [vmem:[#allocation5 + $0x70] sm:$0xff]
      %v286 = vld [vmem:[#allocation5 + $0x78] sm:$0xff]
      %v287 = vmul.f32 %v271, 0.00048828125
      %v288 = vmul.f32 %v272, 0.00048828125
      %v289 = vmul.f32 %v273, 0.00048828125
      %v290 = vmul.f32 %v274, 0.00048828125
      %v291 = vmul.f32 %v275, 0.00048828125
      %v292 = vmul.f32 %v276, 0.00048828125
      %v293 = vmul.f32 %v277, 0.00048828125
      %v294 = vmul.f32 %v278, 0.00048828125
      %v295 = vmul.f32 %v279, 0.00048828125
      %v296 = vmul.f32 %v280, 0.00048828125
      %v297 = vmul.f32 %v281, 0.00048828125
      %v298 = vmul.f32 %v282, 0.00048828125
      %v299 = vmul.f32 %v283, 0.00048828125
      %v300 = vmul.f32 %v284, 0.00048828125
      %v301 = vmul.f32 %v285, 0.00048828125
      %v302 = vmul.f32 %v286, 0.00048828125
      %303 = vst [vmem:[#allocation5] sm:$0xff] %v287
      %304 = vst [vmem:[#allocation5 + $0x8] sm:$0xff] %v288
      %305 = vst [vmem:[#allocation5 + $0x10] sm:$0xff] %v289
      %306 = vst [vmem:[#allocation5 + $0x18] sm:$0xff] %v290
      %307 = vst [vmem:[#allocation5 + $0x20] sm:$0xff] %v291
      %308 = vst [vmem:[#allocation5 + $0x28] sm:$0xff] %v292
      %309 = vst [vmem:[#allocation5 + $0x30] sm:$0xff] %v293
      %310 = vst [vmem:[#allocation5 + $0x38] sm:$0xff] %v294
      %311 = vst [vmem:[#allocation5 + $0x40] sm:$0xff] %v295
      %312 = vst [vmem:[#allocation5 + $0x48] sm:$0xff] %v296
      %313 = vst [vmem:[#allocation5 + $0x50] sm:$0xff] %v297
      %314 = vst [vmem:[#allocation5 + $0x58] sm:$0xff] %v298
      %315 = vst [vmem:[#allocation5 + $0x60] sm:$0xff] %v299
      %316 = vst [vmem:[#allocation5 + $0x68] sm:$0xff] %v300
      %317 = vst [vmem:[#allocation5 + $0x70] sm:$0xff] %v301
      %318 = vst [vmem:[#allocation5 + $0x78] sm:$0xff] %v302
    $region17: #{tpu_custom_call.1} parent=1 // pred_fallthru
      _
    // Predicated region
    $region18: #{tpu_custom_call.1} parent=1 // pred_check
      _
    $region19: #{tpu_custom_call.1} parent=1 // pred_check_branch
      %320 = sbr.rel (0) target = $region21
    $region20: #{tpu_custom_call.1} parent=1 // pred_region
      %s322 = ssub.s32 2048, 2048
      %323 = vsyncadd [#allocation4], %s322
      %s324 = sshll.u32 [#allocation5], 4
      %s325 = int_to_ptr.vmem [resolvable:$true] %s324
      %330 = dma.vmem_to_hbm [thread:$0]  %s325, 2048, %s1, [#allocation4], 128, 128, 8
    $region21: #{tpu_custom_call.1} parent=1 // pred_fallthru
      _
    // Predicated region
    $region22: #{tpu_custom_call.1} parent=1 // pred_check
      _
    $region23: #{tpu_custom_call.1} parent=1 // pred_check_branch
      %332 = sbr.rel (0) target = $region25
    $region24: #{tpu_custom_call.1} parent=1 // pred_region
      %333 = dma.done [#allocation4], 2048
    $region25: #{tpu_custom_call.1} parent=1 // pred_fallthru
      _
    %334 = vsyncpa [#allocation3], 1
    %335 = vsyncpa [#allocation4], 1

</llo_original>
